<compile_context>
chip_gen: v7x
topology: tpu7x:2x2x1
jax: 0.10.0
libtpu: 0.0.40
codegen_flags: <defaults>
</compile_context>

<pallas_src>
import jax
import jax.numpy as jnp
from jax.experimental import pallas as pl
from jax.experimental.pallas import tpu as pltpu


# ---------------------------------------------------------------------------
# Kernels
# ---------------------------------------------------------------------------

def _ode_kernel_fullk(scale_ref, adjm_ref, x_ref, x0_ref, out_ref):
    # scale_ref: (tile_n, 1)  f32      0.5 * sigmoid(alpha) rows
    # adjm_ref:  (tile_n, N)  compute  (adj - I) row block (contiguous HBM read)
    # x_ref:     (N, H)       compute  fully VMEM-resident
    # x0_ref:    (tile_n, H)
    # out_ref:   (tile_n, H)
    ax = jnp.dot(adjm_ref[...], x_ref[...], preferred_element_type=jnp.float32)
    out_ref[...] = (scale_ref[...] * ax
                    + x0_ref[...].astype(jnp.float32)).astype(out_ref.dtype)


def _ode_kernel_ktiled(scale_ref, adjm_ref, x_ref, x0_ref, out_ref, acc_ref):
    # scale_ref: (tile_n, 1)       f32
    # adjm_ref:  (tile_n, tile_k)  compute  (adj - I) tile (row block i, col block k)
    # x_ref:     (N, H)            compute  fully VMEM-resident, sliced per k
    # x0_ref:    (tile_n, H)
    # acc_ref:   (tile_n, H)       f32 accumulator (VMEM scratch)
    k = pl.program_id(1)
    tile_k = adjm_ref.shape[1]

    @pl.when(k == 0)
    def _():
        acc_ref[...] = jnp.zeros_like(acc_ref)

    start = pl.multiple_of(k * tile_k, tile_k)
    xk = x_ref[pl.ds(start, tile_k), :]
    acc_ref[...] += jnp.dot(adjm_ref[...], xk,
                            preferred_element_type=jnp.float32)   # MXU, f32 accum

    @pl.when(k == pl.num_programs(1) - 1)
    def _():
        out_ref[...] = (scale_ref[...] * acc_ref[...]
                        + x0_ref[...].astype(jnp.float32)).astype(out_ref.dtype)


# ---------------------------------------------------------------------------
# Tiling / VMEM helpers
# ---------------------------------------------------------------------------

def _vmem_caps():
    """(tile-budget bytes, vmem_limit bytes), generation aware."""
    try:
        phys = int(pltpu.get_tpu_info().vmem_capacity_bytes)
    except Exception:
        phys = 64 * 1024 * 1024          # conservative (v7x-sized) fallback
    tile_budget = min(int(0.70 * phys), 96 * 1024 * 1024)    # ~45 MiB v7x, ~90 MiB v5e/v6e
    vmem_limit = min(int(0.90 * phys), 116 * 1024 * 1024)    # headroom for internal scratch
    return tile_budget, vmem_limit


def _largest_divisor_tile(n, gran, cap):
    """Largest t <= cap with t % gran == 0 and n % t == 0 (None if none)."""
    cap = min(cap, n)
    t = (cap // gran) * gran
    while t >= gran:
        if n % t == 0:
            return t
        t -= gran
    return None


def _auto_tiles(N, H, adj_isz, x_isz, budget):
    """Pick (tile_n, tile_k).  tile_k == N means the full-K (no accumulator) path."""
    gran_n = 8 if adj_isz >= 4 else 16          # sublane granularity (bf16 packs 16)
    x_res = 2 * N * H * x_isz                   # resident x, (conservatively) double-buffered
    per_row = 2 * (128 + 2 * H) * 4             # scale (lane-padded to 128) + x0 + out, 2 buffers
    # >=2 row blocks when possible -> v7x's 2nd TensorCore gets work (free on 1-TC gens).
    tn_cap = max(gran_n, N // 2) if N >= 2 * gran_n else N

    # ---- full-K path: adj row block (tile_n, N), no accumulator ----
    denom = 2 * N * adj_isz + per_row
    if budget > x_res:
        tn_max = (budget - x_res) // denom
        if tn_max >= gran_n:
            tn = _largest_divisor_tile(N, gran_n, min(tn_max, tn_cap))
            if tn is not None:
                return tn, N

    # ---- K-tiled path: bounded VMEM independent of N ----
    tn = _largest_divisor_tile(N, gran_n, min(256, tn_cap))
    assert tn is not None, "N must be a multiple of 8 (16 for bf16 adj); pad the graph."
    fixed = x_res + tn * (per_row + 4 * H)      # + f32 accumulator
    tk_max = (budget - fixed) // (2 * tn * adj_isz)
    tk = _largest_divisor_tile(N, 128, max(tk_max, 128))
    assert tk is not None, "K-tiled path needs N to be a multiple of 128; pad the graph."
    return tn, tk


# ---------------------------------------------------------------------------
# Wrappers
# ---------------------------------------------------------------------------

def prepare_ode_func(alpha_train, adj, *, compute_dtype=jnp.bfloat16):
    """One-time per-solve precompute (adj and alpha are fixed across nfe calls).

    Returns (scale, adj_minus_I):
      scale       = 0.5 * sigmoid(alpha_train), shape (N, 1), f32
      adj_minus_I = adj - I, cast to compute_dtype (bf16 default; pass
                    jnp.float32 / None to keep full precision).
    """
    N = adj.shape[0]
    scale = (0.5 * jax.nn.sigmoid(alpha_train.astype(jnp.float32))).reshape(N, 1)
    adjm = adj.astype(jnp.float32) - jnp.eye(N, dtype=jnp.float32)
    if compute_dtype is not None:
        adjm = adjm.astype(compute_dtype)
    return scale, adjm


def ode_func_forward(scale, adjm, x, x0, *, tile_n=None, tile_k=None):
    """f = scale * (adj_minus_I @ x) + x0   ==   sigmoid(alpha)[:,None]*0.5*(adj@x - x) + x0"""
    N, H = x.shape
    assert adjm.shape == (N, N) and scale.shape == (N, 1) and x0.shape == (N, H)

    x_mm = x.astype(adjm.dtype)                 # matmul operand dtype follows adj
    adj_isz = jnp.dtype(adjm.dtype).itemsize
    x_isz = jnp.dtype(x_mm.dtype).itemsize
    tile_budget, vmem_limit = _vmem_caps()

    if tile_n is None or tile_k is None:
        auto_n, auto_k = _auto_tiles(N, H, adj_isz, x_isz, tile_budget)
        tile_n = auto_n if tile_n is None else tile_n
        tile_k = auto_k if tile_k is None else tile_k

    gran_n = 8 if adj_isz >= 4 else 16
    # TODO(synk): no padding/masking path for N not a multiple of the tile grid.
    assert N % tile_n == 0 and tile_n % gran_n == 0, "tile_n must divide N and be 8/16-aligned"

    cost = pl.CostEstimate(
        flops=2 * N * N * H,
        transcendentals=0,
        bytes_accessed=N * N * adj_isz + N * H * (x_isz + 8) + 4 * N)

    if tile_k >= N:
        # ---------------- full-K path: 1-D grid over row blocks ----------------
        grid = (N // tile_n,)
        return pl.pallas_call(
            _ode_kernel_fullk,
            out_shape=jax.ShapeDtypeStruct((N, H), x.dtype),
            grid_spec=pltpu.PrefetchScalarGridSpec(
                num_scalar_prefetch=0,
                grid=grid,
                in_specs=[
                    pl.BlockSpec((tile_n, 1), lambda i: (i, 0)),   # scale rows
                    pl.BlockSpec((tile_n, N), lambda i: (i, 0)),   # (adj - I) row block
                    pl.BlockSpec((N, H),      lambda i: (0, 0)),   # x, VMEM-resident
                    pl.BlockSpec((tile_n, H), lambda i: (i, 0)),   # x0 rows
                ],
                out_specs=pl.BlockSpec((tile_n, H), lambda i: (i, 0)),
            ),
            compiler_params=pltpu.CompilerParams(
                dimension_semantics=("parallel",),
                vmem_limit_bytes=vmem_limit),
            cost_estimate=cost,
        )(scale, adjm, x_mm, x0)

    # ---------------- K-tiled path: bounded VMEM, f32 accumulator ----------------
    assert N % tile_k == 0 and tile_k % 128 == 0, "tile_k must divide N and be a multiple of 128"
    grid = (N // tile_n, N // tile_k)
    return pl.pallas_call(
        _ode_kernel_ktiled,
        out_shape=jax.ShapeDtypeStruct((N, H), x.dtype),
        grid_spec=pltpu.PrefetchScalarGridSpec(
            num_scalar_prefetch=0,
            grid=grid,
            in_specs=[
                pl.BlockSpec((tile_n, 1),      lambda i, k: (i, 0)),   # scale rows
                pl.BlockSpec((tile_n, tile_k), lambda i, k: (i, k)),   # (adj - I) tile
                pl.BlockSpec((N, H),           lambda i, k: (0, 0)),   # x, VMEM-resident
                pl.BlockSpec((tile_n, H),      lambda i, k: (i, 0)),   # x0 rows
            ],
            out_specs=pl.BlockSpec((tile_n, H), lambda i, k: (i, 0)),
            scratch_shapes=[pltpu.VMEM((tile_n, H), jnp.float32)],
        ),
        compiler_params=pltpu.CompilerParams(
            dimension_semantics=("parallel", "arbitrary"),
            vmem_limit_bytes=vmem_limit),
        cost_estimate=cost,
    )(scale, adjm, x_mm, x0)


def ode_func_ref(alpha_train, adj, x, x0):
    alph = jax.nn.sigmoid(alpha_train)[:, None]
    ax = adj @ x
    return alph * 0.5 * (ax - x) + x0


def _make_inputs(key, N, H, alpha):
    k_adj, k_x, k_x0 = jax.random.split(key, 3)
    adj_raw = jax.random.uniform(k_adj, (N, N), dtype=jnp.float32)
    adj = adj_raw / jnp.sum(adj_raw, axis=1, keepdims=True)        # row-normalized
    alpha_train = alpha * jnp.ones((N,), dtype=jnp.float32)        # nn.Parameter
    x = jax.random.normal(k_x, (N, H), dtype=jnp.float32)
    x0 = jax.random.normal(k_x0, (N, H), dtype=jnp.float32)
    return alpha_train, adj, x, x0


if __name__ == "__main__":
    H = 32          # opt['hidden_dim']
    ALPHA = 1.0     # opt['alpha']
    key = jax.random.PRNGKey(0)
    k1, k2 = jax.random.split(key)

    # Unused-in-forward parameters from __init__ (kept for fidelity):
    w = jnp.eye(H, dtype=jnp.float32)
    d = jnp.ones((H,), dtype=jnp.float32)
    # TODO(synk): self.nfe (host-side Python call counter) is not kernel work.

    # Case 1: f32 compute, auto tiles -> full-K path, grid (2,) (>=2 row blocks
    # so v7x's second TensorCore is used).  Tight tolerance.
    alpha_train, adj, x, x0 = _make_inputs(k1, 256, H, ALPHA)
    scale, adjm = prepare_ode_func(alpha_train, adj, compute_dtype=jnp.float32)
    out = jax.block_until_ready(ode_func_forward(scale, adjm, x, x0))
    ref = ode_func_ref(alpha_train, adj, x, x0)
    assert out.shape == (256, H) and out.dtype == jnp.float32
    assert jnp.allclose(out, ref, atol=1e-5, rtol=1e-5)

    # Case 2: default bf16 adj/x stream (halves the dominant HBM stream),
    # f32 accumulation and epilogue.  Looser tolerance from bf16 rounding.
    alpha_train, adj, x, x0 = _make_inputs(k2, 512, H, ALPHA)
    scale_bf, adjm_bf = prepare_ode_func(alpha_train, adj)          # bf16 default
    out_bf16 = jax.block_until_ready(ode_func_forward(scale_bf, adjm_bf, x, x0))
    ref = ode_func_ref(alpha_train, adj, x, x0)
    assert jnp.allclose(out_bf16, ref, atol=1e-1, rtol=1e-1)

    # Case 3: explicitly exercise the K-tiled accumulator path (grid (4, 4)),
    # f32 compute, tight tolerance.
    scale32, adjm32 = prepare_ode_func(alpha_train, adj, compute_dtype=jnp.float32)
    out_kt = jax.block_until_ready(
        ode_func_forward(scale32, adjm32, x, x0, tile_n=128, tile_k=128))
    assert jnp.allclose(out_kt, ref, atol=1e-5, rtol=1e-5)

    print("KERNEL_OK")
</pallas_src>

<mosaic_0001>
module attributes {stable_mosaic.version = 11 : i64} {
  func.func @_ode_kernel_fullk(%arg0: i32, %arg1: memref<128x1xf32, #tpu.memory_space<vmem>>, %arg2: memref<128x256xf32, #tpu.memory_space<vmem>>, %arg3: memref<256x32xf32, #tpu.memory_space<vmem>>, %arg4: memref<128x32xf32, #tpu.memory_space<vmem>>, %arg5: memref<128x32xf32, #tpu.memory_space<vmem>>) attributes {dimension_semantics = [#tpu.dimension_semantics<parallel>], iteration_bounds = array<i64: 2>, scalar_prefetch = 0 : i64, scratch_operands = 0 : i64, tpu.core_type = #tpu.core_type<tc>, window_params = [{transform_indices = @transform_0, window_bounds = array<i64: 128, 1>}, {transform_indices = @transform_1, window_bounds = array<i64: 128, 256>}, {pipeline_mode = #tpu.pipeline_mode<synchronous>, transform_indices = @transform_2, window_bounds = array<i64: 256, 32>}, {transform_indices = @transform_3, window_bounds = array<i64: 128, 32>}, {transform_indices = @transform_4, window_bounds = array<i64: 128, 32>}]} {
    %c0 = arith.constant 0 : index
    %c0_0 = arith.constant 0 : index
    %0 = vector.load %arg2[%c0, %c0_0] : memref<128x256xf32, #tpu.memory_space<vmem>>, vector<128x256xf32>
    %c0_1 = arith.constant 0 : index
    %c0_2 = arith.constant 0 : index
    %1 = vector.load %arg3[%c0_1, %c0_2] : memref<256x32xf32, #tpu.memory_space<vmem>>, vector<256x32xf32>
    %cst = arith.constant dense<0.000000e+00> : vector<128x32xf32>
    %2 = tpu.matmul %0, %1, %cst {dimension_numbers = #tpu.dot_dimension_numbers<[1], [0], [0], [1], [0, 0, 1, 1], [], []>} : vector<128x256xf32>, vector<256x32xf32>, vector<128x32xf32> -> vector<128x32xf32>
    %c0_3 = arith.constant 0 : index
    %c0_4 = arith.constant 0 : index
    %3 = vector.load %arg1[%c0_3, %c0_4] : memref<128x1xf32, #tpu.memory_space<vmem>>, vector<128x1xf32>
    %4 = vector.broadcast %3 : vector<128x1xf32> to vector<128x32xf32>
    %5 = arith.mulf %4, %2 : vector<128x32xf32>
    %c0_5 = arith.constant 0 : index
    %c0_6 = arith.constant 0 : index
    %6 = vector.load %arg4[%c0_5, %c0_6] : memref<128x32xf32, #tpu.memory_space<vmem>>, vector<128x32xf32>
    %7 = arith.addf %5, %6 : vector<128x32xf32>
    %c0_7 = arith.constant 0 : index
    %c0_8 = arith.constant 0 : index
    %8 = vector.load %arg5[%c0_7, %c0_8] : memref<128x32xf32, #tpu.memory_space<vmem>>, vector<128x32xf32>
    tpu.vector_store %arg5[%c0_7, %c0_8], %7 {strides = array<i32>} : memref<128x32xf32, #tpu.memory_space<vmem>>, vector<128x32xf32>,
    return
  }
  func.func @transform_0(%arg0: i32) -> (i32, i32) {
    %c0_i32 = arith.constant 0 : i32
    %c0_i32_0 = arith.constant 0 : i32
    return %arg0, %c0_i32 : i32, i32
  }
  func.func @transform_1(%arg0: i32) -> (i32, i32) {
    %c0_i32 = arith.constant 0 : i32
    %c0_i32_0 = arith.constant 0 : i32
    return %arg0, %c0_i32 : i32, i32
  }
  func.func @transform_2(%arg0: i32) -> (i32, i32) {
    %c0_i32 = arith.constant 0 : i32
    %c0_i32_0 = arith.constant 0 : i32
    %c0_i32_1 = arith.constant 0 : i32
    return %c0_i32, %c0_i32_0 : i32, i32
  }
  func.func @transform_3(%arg0: i32) -> (i32, i32) {
    %c0_i32 = arith.constant 0 : i32
    %c0_i32_0 = arith.constant 0 : i32
    return %arg0, %c0_i32 : i32, i32
  }
  func.func @transform_4(%arg0: i32) -> (i32, i32) {
    %c0_i32 = arith.constant 0 : i32
    %c0_i32_0 = arith.constant 0 : i32
    return %arg0, %c0_i32 : i32, i32
  }
}

</mosaic_0001>

<llo_original>
// kernel: tpu_custom_call.1
$region0: #{tpu_custom_call.1}
  #allocation0 [shape = 'u32[]', space=smem, size = 0x4, offset = 0x4, fixed_abs, tag = 'smem constant byte address 0x4 - core index']
  #allocation1 [shape = 'u32[144,128]{1,0:T(1,128)}', space=vmem, size = 0x12000, scoped, tag = 'internal scratch']
  %s0 = inlined_call_operand.vmem [shape: f32[256,1], index: 0, kind: input, shape index: {}]
  %s1 = inlined_call_operand.vmem [shape: f32[256,256], index: 1, kind: input, shape index: {}]
  %s2 = inlined_call_operand.vmem [shape: f32[256,32], index: 2, kind: input, shape index: {}]
  %s3 = inlined_call_operand.vmem [shape: f32[256,32], index: 3, kind: input, shape index: {}]
  %s4 = inlined_call_operand.vmem [shape: f32[256,32], index: 4, kind: output, shape index: {}]
  %s5 = sld [smem:[#allocation0]]
  $region49: #{tpu_custom_call.1} parent=0
    _
  %s7 = ssub.s32 1, %s5
  %s8 = scalar_select 0, %s7, %s5
  loop: start=0, step=1, limit=4
  $region2: #{tpu_custom_call.1} parent=0 // loop_pre_header
    _
  $region3: #{tpu_custom_call.1} parent=0 // loop_header
    %s10 = sphi 0, %s14
    %p11 = scmp.ge.s32.totalorder %s10, 4
    %s20 = sphi 0, %s22
    %s23 = sphi 0, %s20
    %s24 = sphi 0, %s23
    %s40 = sphi 0, %s24
    %s46 = sphi 0, %s48
    %s49 = sphi 0, %s46
    %s50 = sphi 0, %s49
    %s66 = sphi 0, %s50
    %s70 = sphi 0, %s70
    %s72 = sphi 0, %s70
    %s73 = sphi 0, %s72
    %s87 = sphi 0, %s73
    %s93 = sphi 0, %s95
    %s96 = sphi 0, %s93
    %s97 = sphi 0, %s96
    %s113 = sphi 0, %s97
    %s119 = sphi 0, %s121
    %s122 = sphi 0, %s119
    %s123 = sphi 0, %s122
    %s139 = sphi 0, %s123
  $region4: #{tpu_custom_call.1} parent=0 // loop_header_branch
    %13 = sbr.rel (%p11) target = $region8
  $region5: #{tpu_custom_call.1} parent=0 // loop_body
    %s15 = ssub.s32 %s10, 1
    %s16 = ssub.s32 %s10, 2
    %s17 = sadd.s32 %s10, 1
    %s18 = ssub.s32 %s10, %s17
    %p19 = scmp.eq.s32.totalorder %s18, 0
    %s21 = sadd.s32 %s20, 1
    %s22 = scalar_select %p19, %s20, %s21
    %p25 = pneg %p19
    %p26 = scmp.eq.s32.totalorder %s10, 1
    %p27 = por %p25, %p26
    %p28 = scmp.ne.s32.totalorder %s20, %s23
    %p29 = scmp.eq.s32.totalorder %s10, 0
    %p30 = por %p28, %p29
    %p31 = scmp.ne.s32.totalorder %s20, %s23
    %p32 = scmp.eq.s32.totalorder %s15, 1
    %p33 = por %p31, %p32
    %p34 = scmp.ne.s32.totalorder %s23, %s24
    %p35 = scmp.eq.s32.totalorder %s15, 0
    %p36 = por %p34, %p35
    %p37 = scmp.ne.s32.totalorder %s23, %s24
    %p38 = scmp.eq.s32.totalorder %s16, 1
    %p39 = por %p37, %p38
    %p41 = scmp.ne.s32.totalorder %s24, %s40
    %p42 = scmp.eq.s32.totalorder %s16, 0
    %p43 = por %p41, %p42
    %s44 = ssub.s32 %s10, %s17
    %p45 = scmp.eq.s32.totalorder %s44, 0
    %s47 = sadd.s32 %s46, 1
    %s48 = scalar_select %p45, %s46, %s47
    %p51 = pneg %p45
    %p52 = scmp.eq.s32.totalorder %s10, 1
    %p53 = por %p51, %p52
    %p54 = scmp.ne.s32.totalorder %s46, %s49
    %p55 = scmp.eq.s32.totalorder %s10, 0
    %p56 = por %p54, %p55
    %p57 = scmp.ne.s32.totalorder %s46, %s49
    %p58 = scmp.eq.s32.totalorder %s15, 1
    %p59 = por %p57, %p58
    %p60 = scmp.ne.s32.totalorder %s49, %s50
    %p61 = scmp.eq.s32.totalorder %s15, 0
    %p62 = por %p60, %p61
    %p63 = scmp.ne.s32.totalorder %s49, %s50
    %p64 = scmp.eq.s32.totalorder %s16, 1
    %p65 = por %p63, %p64
    %p67 = scmp.ne.s32.totalorder %s50, %s66
    %p68 = scmp.eq.s32.totalorder %s16, 0
    %p69 = por %p67, %p68
    %s71 = sadd.s32 %s70, 1
    %p74 = scmp.eq.s32.totalorder %s10, 1
    %p75 = scmp.ne.s32.totalorder %s70, %s72
    %p76 = scmp.eq.s32.totalorder %s10, 0
    %p77 = por %p75, %p76
    %p78 = scmp.ne.s32.totalorder %s70, %s72
    %p79 = scmp.eq.s32.totalorder %s15, 1
    %p80 = por %p78, %p79
    %p81 = scmp.ne.s32.totalorder %s72, %s73
    %p82 = scmp.eq.s32.totalorder %s15, 0
    %p83 = por %p81, %p82
    %p84 = scmp.ne.s32.totalorder %s72, %s73
    %p85 = scmp.eq.s32.totalorder %s16, 1
    %p86 = por %p84, %p85
    %p88 = scmp.ne.s32.totalorder %s73, %s87
    %p89 = scmp.eq.s32.totalorder %s16, 0
    %p90 = por %p88, %p89
    %s91 = ssub.s32 %s10, %s17
    %p92 = scmp.eq.s32.totalorder %s91, 0
    %s94 = sadd.s32 %s93, 1
    %s95 = scalar_select %p92, %s93, %s94
    %p98 = pneg %p92
    %p99 = scmp.eq.s32.totalorder %s10, 1
    %p100 = por %p98, %p99
    %p101 = scmp.ne.s32.totalorder %s93, %s96
    %p102 = scmp.eq.s32.totalorder %s10, 0
    %p103 = por %p101, %p102
    %p104 = scmp.ne.s32.totalorder %s93, %s96
    %p105 = scmp.eq.s32.totalorder %s15, 1
    %p106 = por %p104, %p105
    %p107 = scmp.ne.s32.totalorder %s96, %s97
    %p108 = scmp.eq.s32.totalorder %s15, 0
    %p109 = por %p107, %p108
    %p110 = scmp.ne.s32.totalorder %s96, %s97
    %p111 = scmp.eq.s32.totalorder %s16, 1
    %p112 = por %p110, %p111
    %p114 = scmp.ne.s32.totalorder %s97, %s113
    %p115 = scmp.eq.s32.totalorder %s16, 0
    %p116 = por %p114, %p115
    %s117 = ssub.s32 %s10, %s17
    %p118 = scmp.eq.s32.totalorder %s117, 0
    %s120 = sadd.s32 %s119, 1
    %s121 = scalar_select %p118, %s119, %s120
    %p124 = pneg %p118
    %p125 = scmp.eq.s32.totalorder %s10, 1
    %p126 = por %p124, %p125
    %p127 = scmp.ne.s32.totalorder %s119, %s122
    %p128 = scmp.eq.s32.totalorder %s10, 0
    %p129 = por %p127, %p128
    %p130 = scmp.ne.s32.totalorder %s119, %s122
    %p131 = scmp.eq.s32.totalorder %s15, 1
    %p132 = por %p130, %p131
    %p133 = scmp.ne.s32.totalorder %s122, %s123
    %p134 = scmp.eq.s32.totalorder %s15, 0
    %p135 = por %p133, %p134
    %p136 = scmp.ne.s32.totalorder %s122, %s123
    %p137 = scmp.eq.s32.totalorder %s16, 1
    %p138 = por %p136, %p137
    %p140 = scmp.ne.s32.totalorder %s123, %s139
    %p141 = scmp.eq.s32.totalorder %s16, 0
    %p142 = por %p140, %p141
    %p143 = scmp.le.s32.totalorder 1, %s10
    %p144 = scmp.lt.s32.totalorder %s10, 3
    %p145 = pnand %p143, %p144
    %p146 = pneg %p145
    // Predicated region
    $region9: #{tpu_custom_call.1} parent=5 // pred_check
      _
    $region10: #{tpu_custom_call.1} parent=5 // pred_check_branch
      %148 = sbr.rel (%p145) target = $region12
    $region11: #{tpu_custom_call.1} parent=5 // pred_region
      %s149 = ssub.s32 %s10, 1
      // Predicated region
      $region13: #{tpu_custom_call.1} parent=11 // pred_check
        %p150 = pneg %p83
      $region14: #{tpu_custom_call.1} parent=11 // pred_check_branch
        %152 = sbr.rel (%p150) target = $region16
      $region15: #{tpu_custom_call.1} parent=11 // pred_region
        _
      $region16: #{tpu_custom_call.1} parent=11 // pred_fallthru
        _
    $region12: #{tpu_custom_call.1} parent=5 // pred_fallthru
      _
    %p153 = scmp.lt.s32.totalorder %s10, 2
    // Predicated region
    $region17: #{tpu_custom_call.1} parent=5 // pred_check
      %p154 = pneg %p153
    $region18: #{tpu_custom_call.1} parent=5 // pred_check_branch
      %156 = sbr.rel (%p154) target = $region20
    $region19: #{tpu_custom_call.1} parent=5 // pred_region
      // Predicated region
      $region21: #{tpu_custom_call.1} parent=19 // pred_check
        %p157 = pneg %p30
      $region22: #{tpu_custom_call.1} parent=19 // pred_check_branch
        %159 = sbr.rel (%p157) target = $region24
      $region23: #{tpu_custom_call.1} parent=19 // pred_region
        %s160 = smul.u32 16, %s10
        %p161 = scmp.lt.s32.totalorder %s160, 31
        %s162 = scalar_select %p161, %s160, 31
        %s163 = smul.addr %s162, 8
        %s164 = scalar_lea.vmem %s0, %s163
        %s165 = smul.u32 16, %s10
      $region24: #{tpu_custom_call.1} parent=19 // pred_fallthru
        _
      // Predicated region
      $region25: #{tpu_custom_call.1} parent=19 // pred_check
        %p166 = pneg %p56
      $region26: #{tpu_custom_call.1} parent=19 // pred_check_branch
        %168 = sbr.rel (%p166) target = $region28
      $region27: #{tpu_custom_call.1} parent=19 // pred_region
        %s169 = smul.u32 16, %s10
        %p170 = scmp.lt.s32.totalorder %s169, 31
        %s171 = scalar_select %p170, %s169, 31
        %s172 = smul.addr %s171, 2
        %s173 = smul.addr %s172, 8
        %s174 = scalar_lea.vmem %s1, %s173
        %s175 = smul.u32 16, %s10
      $region28: #{tpu_custom_call.1} parent=19 // pred_fallthru
        _
      // Predicated region
      $region29: #{tpu_custom_call.1} parent=19 // pred_check
        %p176 = pneg %p103
      $region30: #{tpu_custom_call.1} parent=19 // pred_check_branch
        %178 = sbr.rel (%p176) target = $region32
      $region31: #{tpu_custom_call.1} parent=19 // pred_region
        %s179 = smul.u32 16, %s10
        %p180 = scmp.lt.s32.totalorder %s179, 31
        %s181 = scalar_select %p180, %s179, 31
        %s182 = smul.addr %s181, 8
        %s183 = scalar_lea.vmem %s3, %s182
        %s184 = smul.u32 16, %s10
      $region32: #{tpu_custom_call.1} parent=19 // pred_fallthru
        _
    $region20: #{tpu_custom_call.1} parent=5 // pred_fallthru
      _
    %p185 = scmp.le.s32.totalorder 1, %s10
    %p186 = scmp.lt.s32.totalorder %s10, 3
    %p187 = pnand %p185, %p186
    %p188 = pneg %p187
    // Predicated region
    $region33: #{tpu_custom_call.1} parent=5 // pred_check
      _
    $region34: #{tpu_custom_call.1} parent=5 // pred_check_branch
      %190 = sbr.rel (%p187) target = $region36
    $region35: #{tpu_custom_call.1} parent=5 // pred_region
      %s191 = ssub.s32 %s10, 1
      %s192 = smul.u32 16, %s15
      %p193 = scmp.lt.s32.totalorder %s192, 31
      %s194 = scalar_select %p193, %s192, 31
      %s195 = smul.addr %s194, 8
      %s196 = scalar_lea.vmem %s0, %s195
      %p197 = pneg %p36
      %p198 = pneg %p33
      %s199 = smul.u32 16, %s15
      %p200 = scmp.lt.s32.totalorder %s199, 31
      %s201 = scalar_select %p200, %s199, 31
      %s202 = smul.addr %s201, 2
      %s203 = smul.addr %s202, 8
      %s204 = scalar_lea.vmem %s1, %s203
      %p205 = pneg %p62
      %p206 = pneg %p59
      %p207 = pneg %p83
      %p208 = pneg %p80
      %s209 = smul.u32 16, %s15
      %p210 = scmp.lt.s32.totalorder %s209, 31
      %s211 = scalar_select %p210, %s209, 31
      %s212 = smul.addr %s211, 8
      %s213 = scalar_lea.vmem %s3, %s212
      %p214 = pneg %p109
      %p215 = pneg %p106
      %p216 = pneg %p135
      %p217 = pneg %p132
      %s218 = smul.u32 16, %s15
      %p219 = scmp.lt.s32.totalorder %s218, 31
      %s220 = scalar_select %p219, %s218, 31
      %s221 = smul.addr %s220, 8
      %s222 = scalar_lea.vmem %s4, %s221
      %s223 = smul.u32 16, %s15
      %p224 = scmp.lt.s32.totalorder %s223, 31
      %s225 = scalar_select %p224, %s223, 31
      %s226 = smul.addr %s225, 8
      %s227 = scalar_lea.vmem %s0, %s226
      %s228 = smul.u32 16, %s15
      %s229 = smul.u32 16, %s15
      %p230 = scmp.lt.s32.totalorder %s229, 31
      %s231 = scalar_select %p230, %s229, 31
      %s232 = smul.addr %s231, 2
      %s233 = smul.addr %s232, 8
      %s234 = scalar_lea.vmem %s1, %s233
      %s235 = smul.u32 16, %s15
      %s236 = smul.u32 16, %s15
      %p237 = scmp.lt.s32.totalorder %s236, 31
      %s238 = scalar_select %p237, %s236, 31
      %s239 = smul.addr %s238, 8
      %s240 = scalar_lea.vmem %s3, %s239
      %s241 = smul.u32 16, %s15
      %s242 = smul.u32 16, %s15
      %p243 = scmp.lt.s32.totalorder %s242, 31
      %s244 = scalar_select %p243, %s242, 31
      %s245 = smul.addr %s244, 8
      %s246 = scalar_lea.vmem %s4, %s245
      %s247 = smul.u32 16, %s15
      %v248 = vld [vmem:[%s234] sm:$0xff]
      %v249 = vld [vmem:[%s234 + $0x8] sm:$0xff]
      %v250 = vld [vmem:[%s234 + $0x10] sm:$0xff]
      %v251 = vld [vmem:[%s234 + $0x18] sm:$0xff]
      %v252 = vld [vmem:[%s234 + $0x20] sm:$0xff]
      %v253 = vld [vmem:[%s234 + $0x28] sm:$0xff]
      %v254 = vld [vmem:[%s234 + $0x30] sm:$0xff]
      %v255 = vld [vmem:[%s234 + $0x38] sm:$0xff]
      %v256 = vld [vmem:[%s234 + $0x40] sm:$0xff]
      %v257 = vld [vmem:[%s234 + $0x48] sm:$0xff]
      %v258 = vld [vmem:[%s234 + $0x50] sm:$0xff]
      %v259 = vld [vmem:[%s234 + $0x58] sm:$0xff]
      %v260 = vld [vmem:[%s234 + $0x60] sm:$0xff]
      %v261 = vld [vmem:[%s234 + $0x68] sm:$0xff]
      %v262 = vld [vmem:[%s234 + $0x70] sm:$0xff]
      %v263 = vld [vmem:[%s234 + $0x78] sm:$0xff]
      %v264 = vld [vmem:[%s234 + $0x80] sm:$0xff]
      %v265 = vld [vmem:[%s234 + $0x88] sm:$0xff]
      %v266 = vld [vmem:[%s234 + $0x90] sm:$0xff]
      %v267 = vld [vmem:[%s234 + $0x98] sm:$0xff]
      %v268 = vld [vmem:[%s234 + $0xa0] sm:$0xff]
      %v269 = vld [vmem:[%s234 + $0xa8] sm:$0xff]
      %v270 = vld [vmem:[%s234 + $0xb0] sm:$0xff]
      %v271 = vld [vmem:[%s234 + $0xb8] sm:$0xff]
      %v272 = vld [vmem:[%s234 + $0xc0] sm:$0xff]
      %v273 = vld [vmem:[%s234 + $0xc8] sm:$0xff]
      %v274 = vld [vmem:[%s234 + $0xd0] sm:$0xff]
      %v275 = vld [vmem:[%s234 + $0xd8] sm:$0xff]
      %v276 = vld [vmem:[%s234 + $0xe0] sm:$0xff]
      %v277 = vld [vmem:[%s234 + $0xe8] sm:$0xff]
      %v278 = vld [vmem:[%s234 + $0xf0] sm:$0xff]
      %v279 = vld [vmem:[%s234 + $0xf8] sm:$0xff]
      %v280 = vld [vmem:[%s2] sm:$0xff]
      %v281 = vld [vmem:[%s2 + $0x8] sm:$0xff]
      %v282 = vld [vmem:[%s2 + $0x10] sm:$0xff]
      %v283 = vld [vmem:[%s2 + $0x18] sm:$0xff]
      %v284 = vld [vmem:[%s2 + $0x20] sm:$0xff]
      %v285 = vld [vmem:[%s2 + $0x28] sm:$0xff]
      %v286 = vld [vmem:[%s2 + $0x30] sm:$0xff]
      %v287 = vld [vmem:[%s2 + $0x38] sm:$0xff]
      %v288 = vld [vmem:[%s2 + $0x40] sm:$0xff]
      %v289 = vld [vmem:[%s2 + $0x48] sm:$0xff]
      %v290 = vld [vmem:[%s2 + $0x50] sm:$0xff]
      %v291 = vld [vmem:[%s2 + $0x58] sm:$0xff]
      %v292 = vld [vmem:[%s2 + $0x60] sm:$0xff]
      %v293 = vld [vmem:[%s2 + $0x68] sm:$0xff]
      %v294 = vld [vmem:[%s2 + $0x70] sm:$0xff]
      %v295 = vld [vmem:[%s2 + $0x78] sm:$0xff]
      %v296 = vld [vmem:[%s2 + $0x80] sm:$0xff]
      %v297 = vld [vmem:[%s2 + $0x88] sm:$0xff]
      %v298 = vld [vmem:[%s2 + $0x90] sm:$0xff]
      %v299 = vld [vmem:[%s2 + $0x98] sm:$0xff]
      %v300 = vld [vmem:[%s2 + $0xa0] sm:$0xff]
      %v301 = vld [vmem:[%s2 + $0xa8] sm:$0xff]
      %v302 = vld [vmem:[%s2 + $0xb0] sm:$0xff]
      %v303 = vld [vmem:[%s2 + $0xb8] sm:$0xff]
      %v304 = vld [vmem:[%s2 + $0xc0] sm:$0xff]
      %v305 = vld [vmem:[%s2 + $0xc8] sm:$0xff]
      %v306 = vld [vmem:[%s2 + $0xd0] sm:$0xff]
      %v307 = vld [vmem:[%s2 + $0xd8] sm:$0xff]
      %v308 = vld [vmem:[%s2 + $0xe0] sm:$0xff]
      %v309 = vld [vmem:[%s2 + $0xe8] sm:$0xff]
      %v310 = vld [vmem:[%s2 + $0xf0] sm:$0xff]
      %v311 = vld [vmem:[%s2 + $0xf8] sm:$0xff]
      %312 = vmatprep.subr.mxu0 0.0
      %313 = vmatpush1.msra.mxu0 %v280
      %314 = vmatprep.subr.mxu0 0.0
      %315 = vmatpush1.msra.mxu0 %v281
      %316 = vmatprep.subr.mxu0 0.0
      %317 = vmatpush1.msra.mxu0 %v282
      %318 = vmatprep.subr.mxu0 0.0
      %319 = vmatpush1.msra.mxu0 %v283
      %320 = vmatprep.subr.mxu0 0.0
      %321 = vmatpush1.msra.mxu0 %v284
      %322 = vmatprep.subr.mxu0 0.0
      %323 = vmatpush1.msra.mxu0 %v285
      %324 = vmatprep.subr.mxu0 0.0
      %325 = vmatpush1.msra.mxu0 %v286
      %326 = vmatprep.subr.mxu0 0.0
      %327 = vmatpush1.msra.mxu0 %v287
      %328 = vmatprep.subr.mxu0 0.0
      %329 = vmatpush1.msra.mxu0 %v288
      %330 = vmatprep.subr.mxu0 0.0
      %331 = vmatpush1.msra.mxu0 %v289
      %332 = vmatprep.subr.mxu0 0.0
      %333 = vmatpush1.msra.mxu0 %v290
      %334 = vmatprep.subr.mxu0 0.0
      %335 = vmatpush1.msra.mxu0 %v291
      %336 = vmatprep.subr.mxu0 0.0
      %337 = vmatpush1.msra.mxu0 %v292
      %338 = vmatprep.subr.mxu0 0.0
      %339 = vmatpush1.msra.mxu0 %v293
      %340 = vmatprep.subr.mxu0 0.0
      %341 = vmatpush1.msra.mxu0 %v294
      %342 = vmatprep.subr.mxu0 0.0
      %343 = vmatpush1.msra.mxu0 %v295
      %344 = vmatprep.subr.mxu0 0.0
      %345 = vmatpush1.msra.mxu0 %v296
      %346 = vmatprep.subr.mxu0 0.0
      %347 = vmatpush1.msra.mxu0 %v297
      %348 = vmatprep.subr.mxu0 0.0
      %349 = vmatpush1.msra.mxu0 %v298
      %350 = vmatprep.subr.mxu0 0.0
      %351 = vmatpush1.msra.mxu0 %v299
      %352 = vmatprep.subr.mxu0 0.0
      %353 = vmatpush1.msra.mxu0 %v300
      %354 = vmatprep.subr.mxu0 0.0
      %355 = vmatpush1.msra.mxu0 %v301
      %356 = vmatprep.subr.mxu0 0.0
      %357 = vmatpush1.msra.mxu0 %v302
      %358 = vmatprep.subr.mxu0 0.0
      %359 = vmatpush1.msra.mxu0 %v303
      %360 = vmatprep.subr.mxu0 0.0
      %361 = vmatpush1.msra.mxu0 %v304
      %362 = vmatprep.subr.mxu0 0.0
      %363 = vmatpush1.msra.mxu0 %v305
      %364 = vmatprep.subr.mxu0 0.0
      %365 = vmatpush1.msra.mxu0 %v306
      %366 = vmatprep.subr.mxu0 0.0
      %367 = vmatpush1.msra.mxu0 %v307
      %368 = vmatprep.subr.mxu0 0.0
      %369 = vmatpush1.msra.mxu0 %v308
      %370 = vmatprep.subr.mxu0 0.0
      %371 = vmatpush1.msra.mxu0 %v309
      %372 = vmatprep.subr.mxu0 0.0
      %373 = vmatpush1.msra.mxu0 %v310
      %374 = vmatprep.subr.mxu0 0.0
      %375 = vmatpush1.msra.mxu0 %v311
      %376 = vmatprep.mubr.f32.mxu0 %v249
      %377 = vmatmul.mubr.f32.gmra.mrb[0].mxu0 %v248
      %v378 = vpop.f32.mrb[0].mxu0
      %v379 = vadd.f32 0.0, %v378
      %v380 = vpop.f32.mrb[0].mxu0
      %381 = vmatprep.mubr.f32.mxu0 %v251
      %382 = vmatmul.mubr.f32.gmra.mrb[0].mxu0 %v250
      %v383 = vpop.f32.mrb[0].mxu0
      %v384 = vadd.f32 0.0, %v383
      %v385 = vpop.f32.mrb[0].mxu0
      %386 = vmatprep.mubr.f32.mxu0 %v253
      %387 = vmatmul.mubr.f32.gmra.mrb[0].mxu0 %v252
      %v388 = vpop.f32.mrb[0].mxu0
      %v389 = vadd.f32 0.0, %v388
      %v390 = vpop.f32.mrb[0].mxu0
      %391 = vmatprep.mubr.f32.mxu0 %v255
      %392 = vmatmul.mubr.f32.gmra.mrb[0].mxu0 %v254
      %v393 = vpop.f32.mrb[0].mxu0
      %v394 = vadd.f32 0.0, %v393
      %v395 = vpop.f32.mrb[0].mxu0
      %396 = vmatprep.mubr.f32.mxu0 %v257
      %397 = vmatmul.mubr.f32.gmra.mrb[0].mxu0 %v256
      %v398 = vpop.f32.mrb[0].mxu0
      %v399 = vadd.f32 0.0, %v398
      %v400 = vpop.f32.mrb[0].mxu0
      %401 = vmatprep.mubr.f32.mxu0 %v259
      %402 = vmatmul.mubr.f32.gmra.mrb[0].mxu0 %v258
      %v403 = vpop.f32.mrb[0].mxu0
      %v404 = vadd.f32 0.0, %v403
      %v405 = vpop.f32.mrb[0].mxu0
      %406 = vmatprep.mubr.f32.mxu0 %v261
      %407 = vmatmul.mubr.f32.gmra.mrb[0].mxu0 %v260
      %v408 = vpop.f32.mrb[0].mxu0
      %v409 = vadd.f32 0.0, %v408
      %v410 = vpop.f32.mrb[0].mxu0
      %411 = vmatprep.mubr.f32.mxu0 %v263
      %412 = vmatmul.mubr.f32.gmra.mrb[0].mxu0 %v262
      %v413 = vpop.f32.mrb[0].mxu0
      %v414 = vadd.f32 0.0, %v413
      %v415 = vpop.f32.mrb[0].mxu0
      %416 = vmatprep.mubr.f32.mxu0 %v265
      %417 = vmatmul.mubr.f32.gmra.mrb[0].mxu0 %v264
      %v418 = vpop.f32.mrb[0].mxu0
      %v419 = vadd.f32 0.0, %v418
      %v420 = vpop.f32.mrb[0].mxu0
      %421 = vmatprep.mubr.f32.mxu0 %v267
      %422 = vmatmul.mubr.f32.gmra.mrb[0].mxu0 %v266
      %v423 = vpop.f32.mrb[0].mxu0
      %v424 = vadd.f32 0.0, %v423
      %v425 = vpop.f32.mrb[0].mxu0
      %426 = vmatprep.mubr.f32.mxu0 %v269
      %427 = vmatmul.mubr.f32.gmra.mrb[0].mxu0 %v268
      %v428 = vpop.f32.mrb[0].mxu0
      %v429 = vadd.f32 0.0, %v428
      %v430 = vpop.f32.mrb[0].mxu0
      %431 = vmatprep.mubr.f32.mxu0 %v271
      %432 = vmatmul.mubr.f32.gmra.mrb[0].mxu0 %v270
      %v433 = vpop.f32.mrb[0].mxu0
      %v434 = vadd.f32 0.0, %v433
      %v435 = vpop.f32.mrb[0].mxu0
      %436 = vmatprep.mubr.f32.mxu0 %v273
      %437 = vmatmul.mubr.f32.gmra.mrb[0].mxu0 %v272
      %v438 = vpop.f32.mrb[0].mxu0
      %v439 = vadd.f32 0.0, %v438
      %v440 = vpop.f32.mrb[0].mxu0
      %441 = vmatprep.mubr.f32.mxu0 %v275
      %442 = vmatmul.mubr.f32.gmra.mrb[0].mxu0 %v274
      %v443 = vpop.f32.mrb[0].mxu0
      %v444 = vadd.f32 0.0, %v443
      %v445 = vpop.f32.mrb[0].mxu0
      %446 = vmatprep.mubr.f32.mxu0 %v277
      %447 = vmatmul.mubr.f32.gmra.mrb[0].mxu0 %v276
      %v448 = vpop.f32.mrb[0].mxu0
      %v449 = vadd.f32 0.0, %v448
      %v450 = vpop.f32.mrb[0].mxu0
      %451 = vmatprep.mubr.f32.mxu0 %v279
      %452 = vmatmul.mubr.f32.gmra.mrb[0].mxu0 %v278
      %v453 = vpop.f32.mrb[0].mxu0
      %v454 = vadd.f32 0.0, %v453
      %v455 = vpop.f32.mrb[0].mxu0
      %456 = vdwg.mxu0
      %v457 = vld [vmem:[%s227] sm:$0xff]
      %v458 = vld [vmem:[%s227 + $0x8] sm:$0xff]
      %v459 = vld [vmem:[%s227 + $0x10] sm:$0xff]
      %v460 = vld [vmem:[%s227 + $0x18] sm:$0xff]
      %v461 = vld [vmem:[%s227 + $0x20] sm:$0xff]
      %v462 = vld [vmem:[%s227 + $0x28] sm:$0xff]
      %v463 = vld [vmem:[%s227 + $0x30] sm:$0xff]
      %v464 = vld [vmem:[%s227 + $0x38] sm:$0xff]
      %v465 = vld [vmem:[%s227 + $0x40] sm:$0xff]
      %v466 = vld [vmem:[%s227 + $0x48] sm:$0xff]
      %v467 = vld [vmem:[%s227 + $0x50] sm:$0xff]
      %v468 = vld [vmem:[%s227 + $0x58] sm:$0xff]
      %v469 = vld [vmem:[%s227 + $0x60] sm:$0xff]
      %v470 = vld [vmem:[%s227 + $0x68] sm:$0xff]
      %v471 = vld [vmem:[%s227 + $0x70] sm:$0xff]
      %v472 = vld [vmem:[%s227 + $0x78] sm:$0xff]
      %474 = vset.pattern.permute.xlu0 0
      %475 = vperm.xlu0 %474, %v457
      %v476 = vpop.permute.xlu0 %475
      %479 = vset.pattern.permute.xlu0 0
      %480 = vperm.xlu0 %479, %v458
      %v481 = vpop.permute.xlu0 %480
      %484 = vset.pattern.permute.xlu0 0
      %485 = vperm.xlu0 %484, %v459
      %v486 = vpop.permute.xlu0 %485
      %489 = vset.pattern.permute.xlu0 0
      %490 = vperm.xlu0 %489, %v460
      %v491 = vpop.permute.xlu0 %490
      %494 = vset.pattern.permute.xlu0 0
      %495 = vperm.xlu0 %494, %v461
      %v496 = vpop.permute.xlu0 %495
      %499 = vset.pattern.permute.xlu0 0
      %500 = vperm.xlu0 %499, %v462
      %v501 = vpop.permute.xlu0 %500
      %504 = vset.pattern.permute.xlu0 0
      %505 = vperm.xlu0 %504, %v463
      %v506 = vpop.permute.xlu0 %505
      %509 = vset.pattern.permute.xlu0 0
      %510 = vperm.xlu0 %509, %v464
      %v511 = vpop.permute.xlu0 %510
      %514 = vset.pattern.permute.xlu0 0
      %515 = vperm.xlu0 %514, %v465
      %v516 = vpop.permute.xlu0 %515
      %519 = vset.pattern.permute.xlu0 0
      %520 = vperm.xlu0 %519, %v466
      %v521 = vpop.permute.xlu0 %520
      %524 = vset.pattern.permute.xlu0 0
      %525 = vperm.xlu0 %524, %v467
      %v526 = vpop.permute.xlu0 %525
      %529 = vset.pattern.permute.xlu0 0
      %530 = vperm.xlu0 %529, %v468
      %v531 = vpop.permute.xlu0 %530
      %534 = vset.pattern.permute.xlu0 0
      %535 = vperm.xlu0 %534, %v469
      %v536 = vpop.permute.xlu0 %535
      %539 = vset.pattern.permute.xlu0 0
      %540 = vperm.xlu0 %539, %v470
      %v541 = vpop.permute.xlu0 %540
      %544 = vset.pattern.permute.xlu0 0
      %545 = vperm.xlu0 %544, %v471
      %v546 = vpop.permute.xlu0 %545
      %549 = vset.pattern.permute.xlu0 0
      %550 = vperm.xlu0 %549, %v472
      %v551 = vpop.permute.xlu0 %550
      %v553 = vmul.f32 %v476, %v379
      %v554 = vmul.f32 %v481, %v384
      %v555 = vmul.f32 %v486, %v389
      %v556 = vmul.f32 %v491, %v394
      %v557 = vmul.f32 %v496, %v399
      %v558 = vmul.f32 %v501, %v404
      %v559 = vmul.f32 %v506, %v409
      %v560 = vmul.f32 %v511, %v414
      %v561 = vmul.f32 %v516, %v419
      %v562 = vmul.f32 %v521, %v424
      %v563 = vmul.f32 %v526, %v429
      %v564 = vmul.f32 %v531, %v434
      %v565 = vmul.f32 %v536, %v439
      %v566 = vmul.f32 %v541, %v444
      %v567 = vmul.f32 %v546, %v449
      %v568 = vmul.f32 %v551, %v454
      %v569 = vld [vmem:[%s240] sm:$0xff]
      %v570 = vld [vmem:[%s240 + $0x8] sm:$0xff]
      %v571 = vld [vmem:[%s240 + $0x10] sm:$0xff]
      %v572 = vld [vmem:[%s240 + $0x18] sm:$0xff]
      %v573 = vld [vmem:[%s240 + $0x20] sm:$0xff]
      %v574 = vld [vmem:[%s240 + $0x28] sm:$0xff]
      %v575 = vld [vmem:[%s240 + $0x30] sm:$0xff]
      %v576 = vld [vmem:[%s240 + $0x38] sm:$0xff]
      %v577 = vld [vmem:[%s240 + $0x40] sm:$0xff]
      %v578 = vld [vmem:[%s240 + $0x48] sm:$0xff]
      %v579 = vld [vmem:[%s240 + $0x50] sm:$0xff]
      %v580 = vld [vmem:[%s240 + $0x58] sm:$0xff]
      %v581 = vld [vmem:[%s240 + $0x60] sm:$0xff]
      %v582 = vld [vmem:[%s240 + $0x68] sm:$0xff]
      %v583 = vld [vmem:[%s240 + $0x70] sm:$0xff]
      %v584 = vld [vmem:[%s240 + $0x78] sm:$0xff]
      %v585 = vadd.f32 %v553, %v569
      %v586 = vadd.f32 %v554, %v570
      %v587 = vadd.f32 %v555, %v571
      %v588 = vadd.f32 %v556, %v572
      %v589 = vadd.f32 %v557, %v573
      %v590 = vadd.f32 %v558, %v574
      %v591 = vadd.f32 %v559, %v575
      %v592 = vadd.f32 %v560, %v576
      %v593 = vadd.f32 %v561, %v577
      %v594 = vadd.f32 %v562, %v578
      %v595 = vadd.f32 %v563, %v579
      %v596 = vadd.f32 %v564, %v580
      %v597 = vadd.f32 %v565, %v581
      %v598 = vadd.f32 %v566, %v582
      %v599 = vadd.f32 %v567, %v583
      %v600 = vadd.f32 %v568, %v584
      %vm601 = vcmask 261120
      %602 = vst.msk [vmem:[%s246] sm:$0xff] %vm601, %v585
      %603 = vst.msk [vmem:[%s246 + $0x8] sm:$0xff] %vm601, %v586
      %604 = vst.msk [vmem:[%s246 + $0x10] sm:$0xff] %vm601, %v587
      %605 = vst.msk [vmem:[%s246 + $0x18] sm:$0xff] %vm601, %v588
      %606 = vst.msk [vmem:[%s246 + $0x20] sm:$0xff] %vm601, %v589
      %607 = vst.msk [vmem:[%s246 + $0x28] sm:$0xff] %vm601, %v590
      %608 = vst.msk [vmem:[%s246 + $0x30] sm:$0xff] %vm601, %v591
      %609 = vst.msk [vmem:[%s246 + $0x38] sm:$0xff] %vm601, %v592
      %610 = vst.msk [vmem:[%s246 + $0x40] sm:$0xff] %vm601, %v593
      %611 = vst.msk [vmem:[%s246 + $0x48] sm:$0xff] %vm601, %v594
      %612 = vst.msk [vmem:[%s246 + $0x50] sm:$0xff] %vm601, %v595
      %613 = vst.msk [vmem:[%s246 + $0x58] sm:$0xff] %vm601, %v596
      %614 = vst.msk [vmem:[%s246 + $0x60] sm:$0xff] %vm601, %v597
      %615 = vst.msk [vmem:[%s246 + $0x68] sm:$0xff] %vm601, %v598
      %616 = vst.msk [vmem:[%s246 + $0x70] sm:$0xff] %vm601, %v599
      %617 = vst.msk [vmem:[%s246 + $0x78] sm:$0xff] %vm601, %v600
      %s618 = smul.u32 16, %s15
      %p619 = scmp.lt.s32.totalorder %s618, 31
      %s620 = scalar_select %p619, %s618, 31
      %s621 = smul.addr %s620, 8
      %s622 = scalar_lea.vmem %s4, %s621
      // Predicated region
      $region37: #{tpu_custom_call.1} parent=35 // pred_check
        %p623 = pneg %p132
      $region38: #{tpu_custom_call.1} parent=35 // pred_check_branch
        %625 = sbr.rel (%p623) target = $region40
      $region39: #{tpu_custom_call.1} parent=35 // pred_region
        %s626 = smul.u32 16, %s15
      $region40: #{tpu_custom_call.1} parent=35 // pred_fallthru
        _
    $region36: #{tpu_custom_call.1} parent=5 // pred_fallthru
      _
    %p627 = scmp.le.s32.totalorder 2, %s10
    // Predicated region
    $region41: #{tpu_custom_call.1} parent=5 // pred_check
      %p628 = pneg %p627
    $region42: #{tpu_custom_call.1} parent=5 // pred_check_branch
      %630 = sbr.rel (%p628) target = $region44
    $region43: #{tpu_custom_call.1} parent=5 // pred_region
      %s631 = ssub.s32 %s10, 2
      // Predicated region
      $region45: #{tpu_custom_call.1} parent=43 // pred_check
        %p632 = pneg %p138
      $region46: #{tpu_custom_call.1} parent=43 // pred_check_branch
        %634 = sbr.rel (%p632) target = $region48
      $region47: #{tpu_custom_call.1} parent=43 // pred_region
        %s635 = smul.u32 16, %s16
        %p636 = scmp.lt.s32.totalorder %s635, 31
        %s637 = scalar_select %p636, %s635, 31
        %s638 = smul.addr %s637, 8
        %s639 = scalar_lea.vmem %s4, %s638
      $region48: #{tpu_custom_call.1} parent=43 // pred_fallthru
        _
    $region44: #{tpu_custom_call.1} parent=5 // pred_fallthru
      _
  $region6: #{tpu_custom_call.1} parent=0 // loop_footer
    %s14 = sadd.s32 1, %s10
  $region7: #{tpu_custom_call.1} parent=0 // loop_footer_branch
    %9 = sbr.rel target = $region3
  $region8: #{tpu_custom_call.1} parent=0 // loop_exit
    _

</llo_original>
